<compile_context>
chip_gen: v6e
topology: v6e:2x2x1
jax: 0.10.0
libtpu: 0.0.40
codegen_flags: <defaults>
</compile_context>

<pallas_src>
import functools

import jax
import jax.numpy as jnp
from jax.experimental import pallas as pl
from jax.experimental.pallas import tpu as pltpu

STATE_DIM = 2        # MountainCarContinuous observation dim
ACTION_DIM = 1
ACTION_RANGE = 1.0
HIDDEN = 16

# Packed parameter slab layout: columns of a [HIDDEN, P_COLS] f32 array.
_C_W2 = 0                       # w2         [HIDDEN, HIDDEN]     (lane 0 -> clean MXU operand)
_C_W1 = _C_W2 + HIDDEN          # w1         [HIDDEN, STATE_DIM]
_C_B1 = _C_W1 + STATE_DIM       # b1         [HIDDEN, 1]
_C_B2 = _C_B1 + 1               # b2         [HIDDEN, 1]
_C_W3 = _C_B2 + 1               # w3 column  [HIDDEN, ACTION_DIM]
_C_B3 = _C_W3 + ACTION_DIM      # b3         (row 0 only)
P_COLS = _C_B3 + 1              # = 22

# Batch tile (HBM<->VMEM DMA granularity).  Sweep 1024..8192 (multiples of 128).
DEFAULT_BLOCK_B = 2048
# Compute sub-chunk (lanes) inside one grid step; bounds vreg pressure at large tiles.
DEFAULT_SUB_B = 512


def _round_up(x, m):
    return (x + m - 1) // m * m


def _cdiv(a, b):
    return (a + b - 1) // b


def _pick_chunk(bb, sub_b):
    """Largest multiple of 128 that divides bb and is <= sub_b."""
    units = bb // 128
    for k in range(max(1, min(units, sub_b // 128)), 0, -1):
        if units % k == 0:
            return 128 * k
    return 128


def _choose_tiles(batch, block_b, sub_b):
    bb = min(_round_up(block_b, 128), _round_up(batch, 128))
    if batch >= 256:
        # Guarantee >= 2 grid steps so the "parallel" batch axis can shard across the
        # two TensorCores on v7x (cheap on single-TC v5e/v6e: one extra ~0.35us step).
        bb = min(bb, _round_up(_cdiv(batch, 2), 128))
    bb = max(bb, 128)
    cb = _pick_chunk(bb, _round_up(max(sub_b, 128), 128))
    return bb, cb


def actor_kernel(x_ref, p_ref, o_ref, *, n_sub, cb):
    # Resident packed parameters: small static ref-slices of the single [16, 22] slab.
    w2 = p_ref[:, _C_W2:_C_W2 + HIDDEN]                          # [16, 16]
    w1_cols = [p_ref[:, _C_W1 + k:_C_W1 + k + 1] for k in range(STATE_DIM)]   # [16, 1] each
    b1 = p_ref[:, _C_B1:_C_B1 + 1]                               # [16, 1]
    b2 = p_ref[:, _C_B2:_C_B2 + 1]                               # [16, 1]
    w3 = p_ref[:, _C_W3:_C_W3 + 1]                               # [16, 1]   (ACTION_DIM == 1)
    b3 = p_ref[0:1, _C_B3:_C_B3 + 1]                             # [1, 1]

    # Fully-unrolled sub-chunk loop (same effect as lax.fori_loop(..., unroll=True)):
    # each chunk's [16, cb] intermediates die at its store, bounding live ranges while
    # the HBM<->VMEM tile stays large.  Offsets are static and 128-aligned.
    for c in range(n_sub):
        lo = c * cb
        x = x_ref[:, lo:lo + cb]                                 # [STATE_DIM, cb]

        # fc1: K == 2 -> unrolled VPU broadcast FMAs (MXU would be >98% padding).
        h1 = b1
        for k in range(STATE_DIM):
            h1 = h1 + w1_cols[k] * x[k:k + 1, :]
        h1 = jnp.maximum(h1, 0.0)                                # [16, cb]

        # fc2: 16x16 contraction on the MXU; N = cb is lane-dense.
        h2 = jnp.dot(w2, h1, preferred_element_type=jnp.float32) + b2
        h2 = jnp.maximum(h2, 0.0)                                # [16, cb]

        # fc3: single output row -> VPU multiply + sublane reduce (XLU) + tanh (EUP).
        a = jnp.sum(w3 * h2, axis=0, keepdims=True) + b3         # [1, cb]
        a = jnp.tanh(a)
        if ACTION_RANGE != 1.0:                                  # elide *1.0 at trace time
            a = a * ACTION_RANGE
        o_ref[:, lo:lo + cb] = a.astype(o_ref.dtype)


def pack_params(params):
    """Pack PyTorch-layout params (w*: [out, in], b*: [out]) into one [HIDDEN, P_COLS]
    f32 slab so the kernel issues a single resident-weight DMA instead of seven.
    In a training loop, pack once per parameter update (or run under jit)."""
    w1 = params["w1"].astype(jnp.float32)                        # [16, 2]
    w2 = params["w2"].astype(jnp.float32)                        # [16, 16]
    b1 = params["b1"].reshape(HIDDEN, 1).astype(jnp.float32)
    b2 = params["b2"].reshape(HIDDEN, 1).astype(jnp.float32)
    # ACTION_DIM == 1: reshaping the [1, HIDDEN] weight gives exactly its transpose column.
    w3 = params["w3"].reshape(HIDDEN, ACTION_DIM).astype(jnp.float32)
    b3 = jnp.zeros((HIDDEN, 1), jnp.float32).at[0, 0].set(params["b3"][0])
    return jnp.concatenate([w2, w1, b1, b2, w3, b3], axis=1)     # [16, 22]


def actor_forward(state, params, *, block_b=DEFAULT_BLOCK_B, sub_b=DEFAULT_SUB_B):
    """state: [B, STATE_DIM] float32 -> [B, ACTION_DIM] float32 (PyTorch semantics)."""
    batch = state.shape[0]
    bb, cb = _choose_tiles(batch, block_b, sub_b)
    grid = (_cdiv(batch, bb),)                                   # ragged last tile allowed

    x = state.astype(jnp.float32).T                              # [STATE_DIM, B]; no zero-pad copy
    packed = pack_params(params)                                 # [HIDDEN, P_COLS]

    cost = pl.CostEstimate(
        flops=2 * batch * (STATE_DIM * HIDDEN + HIDDEN * HIDDEN + HIDDEN * ACTION_DIM),
        transcendentals=batch * ACTION_DIM,
        bytes_accessed=4 * (batch * STATE_DIM + batch * ACTION_DIM + HIDDEN * P_COLS),
    )

    out = pl.pallas_call(
        functools.partial(actor_kernel, n_sub=bb // cb, cb=cb),
        out_shape=jax.ShapeDtypeStruct((ACTION_DIM, batch), jnp.float32),
        grid=grid,
        in_specs=[
            pl.BlockSpec((STATE_DIM, bb), lambda i: (0, i)),     # state tile (pipelined)
            pl.BlockSpec((HIDDEN, P_COLS), lambda i: (0, 0)),    # packed params (resident, 1 DMA)
        ],
        out_specs=pl.BlockSpec((ACTION_DIM, bb), lambda i: (0, i)),   # lane-dense output tile
        compiler_params=pltpu.CompilerParams(
            dimension_semantics=("parallel",)),                  # v7x: try pltpu.CORE_PARALLEL if one TC idles
        cost_estimate=cost,
    )(x, packed)

    return out.T                                                 # [B, ACTION_DIM] (metadata-only for B x 1)


def init_params(key):
    """Deterministic PyTorch-nn.Linear-style uniform init, stored in PyTorch layout
    (weights [out_features, in_features], biases [out_features])."""
    def linear(k, fan_in, fan_out):
        kw, kb = jax.random.split(k)
        bound = 1.0 / jnp.sqrt(float(fan_in))
        w = jax.random.uniform(kw, (fan_out, fan_in), jnp.float32, -bound, bound)
        b = jax.random.uniform(kb, (fan_out,), jnp.float32, -bound, bound)
        return w, b

    k1, k2, k3 = jax.random.split(key, 3)
    w1, b1 = linear(k1, STATE_DIM, HIDDEN)
    w2, b2 = linear(k2, HIDDEN, HIDDEN)
    w3, b3 = linear(k3, HIDDEN, ACTION_DIM)
    return {"w1": w1, "b1": b1, "w2": w2, "b2": b2, "w3": w3, "b3": b3}


def actor_ref(state, params):
    """Pure-JAX reference (PyTorch semantics: y = x @ W.T + b)."""
    h1 = jnp.maximum(state @ params["w1"].T + params["b1"], 0.0)
    h2 = jnp.maximum(h1 @ params["w2"].T + params["b2"], 0.0)
    return jnp.tanh(h2 @ params["w3"].T + params["b3"]) * ACTION_RANGE


if __name__ == "__main__":
    key = jax.random.PRNGKey(0)
    k_params, k_state = jax.random.split(key)
    params = init_params(k_params)

    # batch=8: single (ragged) grid step.  batch=300: 2 grid steps + ragged tail,
    # exercising the cdiv grid and the v7x-friendly bb cap.
    for batch in (8, 300):
        ks = jax.random.fold_in(k_state, batch)
        state = jax.random.normal(ks, (batch, STATE_DIM), dtype=jnp.float32)

        out = jax.block_until_ready(actor_forward(state, params))
        ref = actor_ref(state, params)

        assert out.shape == (batch, ACTION_DIM)
        assert jnp.allclose(out, ref, atol=1e-5, rtol=1e-5), float(jnp.max(jnp.abs(out - ref)))

    print("KERNEL_OK")
</pallas_src>

<mosaic_0001>
module attributes {stable_mosaic.version = 11 : i64} {
  func.func @actor_kernel(%arg0: i32, %arg1: memref<2x128xf32, #tpu.memory_space<vmem>>, %arg2: memref<16x22xf32, #tpu.memory_space<vmem>>, %arg3: memref<1x128xf32, #tpu.memory_space<vmem>>) attributes {dimension_semantics = [#tpu.dimension_semantics<parallel>], iteration_bounds = array<i64: 1>, scalar_prefetch = 0 : i64, scratch_operands = 0 : i64, tpu.core_type = #tpu.core_type<tc>, window_params = [{transform_indices = @transform_0, window_bounds = array<i64: 2, 128>}, {pipeline_mode = #tpu.pipeline_mode<synchronous>, transform_indices = @transform_1, window_bounds = array<i64: 16, 22>}, {transform_indices = @transform_2, window_bounds = array<i64: 1, 128>}]} {
    %c0 = arith.constant 0 : index
    %c0_0 = arith.constant 0 : index
    %0 = vector.load %arg2[%c0, %c0_0] : memref<16x22xf32, #tpu.memory_space<vmem>>, vector<16x16xf32>
    %c0_1 = arith.constant 0 : index
    %c16 = arith.constant 16 : index
    %1 = vector.load %arg2[%c0_1, %c16] : memref<16x22xf32, #tpu.memory_space<vmem>>, vector<16x1xf32>
    %c0_2 = arith.constant 0 : index
    %c17 = arith.constant 17 : index
    %2 = vector.load %arg2[%c0_2, %c17] : memref<16x22xf32, #tpu.memory_space<vmem>>, vector<16x1xf32>
    %c0_3 = arith.constant 0 : index
    %c18 = arith.constant 18 : index
    %3 = vector.load %arg2[%c0_3, %c18] : memref<16x22xf32, #tpu.memory_space<vmem>>, vector<16x1xf32>
    %c0_4 = arith.constant 0 : index
    %c19 = arith.constant 19 : index
    %4 = vector.load %arg2[%c0_4, %c19] : memref<16x22xf32, #tpu.memory_space<vmem>>, vector<16x1xf32>
    %c0_5 = arith.constant 0 : index
    %c20 = arith.constant 20 : index
    %5 = vector.load %arg2[%c0_5, %c20] : memref<16x22xf32, #tpu.memory_space<vmem>>, vector<16x1xf32>
    %c0_6 = arith.constant 0 : index
    %c21 = arith.constant 21 : index
    %6 = vector.load %arg2[%c0_6, %c21] : memref<16x22xf32, #tpu.memory_space<vmem>>, vector<1x1xf32>
    %c0_7 = arith.constant 0 : index
    %c0_8 = arith.constant 0 : index
    %7 = vector.load %arg1[%c0_7, %c0_8] : memref<2x128xf32, #tpu.memory_space<vmem>>, vector<2x128xf32>
    %8 = vector.extract_strided_slice %7 {offsets = [0, 0], sizes = [1, 128], strides = [1, 1]} : vector<2x128xf32> to vector<1x128xf32>
    %9 = vector.broadcast %1 : vector<16x1xf32> to vector<16x128xf32>
    %10 = vector.broadcast %8 : vector<1x128xf32> to vector<16x128xf32>
    %11 = arith.mulf %9, %10 : vector<16x128xf32>
    %12 = vector.broadcast %3 : vector<16x1xf32> to vector<16x128xf32>
    %13 = arith.addf %12, %11 : vector<16x128xf32>
    %14 = vector.extract_strided_slice %7 {offsets = [1, 0], sizes = [1, 128], strides = [1, 1]} : vector<2x128xf32> to vector<1x128xf32>
    %15 = vector.broadcast %2 : vector<16x1xf32> to vector<16x128xf32>
    %16 = vector.broadcast %14 : vector<1x128xf32> to vector<16x128xf32>
    %17 = arith.mulf %15, %16 : vector<16x128xf32>
    %18 = arith.addf %13, %17 : vector<16x128xf32>
    %cst = arith.constant 0.000000e+00 : f32
    %19 = vector.broadcast %cst : f32 to vector<16x128xf32>
    %20 = arith.maximumf %18, %19 : vector<16x128xf32>
    %cst_9 = arith.constant dense<0.000000e+00> : vector<16x128xf32>
    %21 = tpu.matmul %0, %20, %cst_9 {dimension_numbers = #tpu.dot_dimension_numbers<[1], [0], [0], [1], [0, 0, 1, 1], [], []>} : vector<16x16xf32>, vector<16x128xf32>, vector<16x128xf32> -> vector<16x128xf32>
    %22 = vector.broadcast %4 : vector<16x1xf32> to vector<16x128xf32>
    %23 = arith.addf %21, %22 : vector<16x128xf32>
    %cst_10 = arith.constant 0.000000e+00 : f32
    %24 = vector.broadcast %cst_10 : f32 to vector<16x128xf32>
    %25 = arith.maximumf %23, %24 : vector<16x128xf32>
    %26 = vector.broadcast %5 : vector<16x1xf32> to vector<16x128xf32>
    %27 = arith.mulf %26, %25 : vector<16x128xf32>
    %cst_11 = arith.constant dense<0.000000e+00> : vector<128xf32>
    %28 = vector.multi_reduction <add>, %27, %cst_11 [0] : vector<16x128xf32> to vector<128xf32>
    %29 = vector.shape_cast %28 : vector<128xf32> to vector<1x128xf32>
    %30 = vector.broadcast %6 : vector<1x1xf32> to vector<1x128xf32>
    %31 = arith.addf %29, %30 : vector<1x128xf32>
    %32 = math.tanh %31 : vector<1x128xf32>
    %c0_12 = arith.constant 0 : index
    %c0_13 = arith.constant 0 : index
    %33 = vector.load %arg3[%c0_12, %c0_13] : memref<1x128xf32, #tpu.memory_space<vmem>>, vector<1x128xf32>
    tpu.vector_store %arg3[%c0_12, %c0_13], %32 {strides = array<i32>} : memref<1x128xf32, #tpu.memory_space<vmem>>, vector<1x128xf32>,
    return
  }
  func.func @transform_0(%arg0: i32) -> (i32, i32) {
    %c0_i32 = arith.constant 0 : i32
    %c0_i32_0 = arith.constant 0 : i32
    return %c0_i32, %arg0 : i32, i32
  }
  func.func @transform_1(%arg0: i32) -> (i32, i32) {
    %c0_i32 = arith.constant 0 : i32
    %c0_i32_0 = arith.constant 0 : i32
    %c0_i32_1 = arith.constant 0 : i32
    return %c0_i32, %c0_i32_0 : i32, i32
  }
  func.func @transform_2(%arg0: i32) -> (i32, i32) {
    %c0_i32 = arith.constant 0 : i32
    %c0_i32_0 = arith.constant 0 : i32
    return %c0_i32, %arg0 : i32, i32
  }
}

</mosaic_0001>

<llo_original>
// kernel: tpu_custom_call.1
$region0: #{tpu_custom_call.1}
  #allocation0 [shape = 'u32[]', space=smem, size = 0x4, offset = 0x4, fixed_abs, tag = 'smem constant byte address 0x4 - core index']
  #allocation1 [shape = 'u32[144,128]{1,0:T(1,128)}', space=vmem, size = 0x12000, scoped, tag = 'internal scratch']
  %s0 = inlined_call_operand.hbm [shape: f32[2,8], index: 0, kind: input, shape index: {}]
  %s1 = inlined_call_operand.hbm [shape: f32[16,22], index: 1, kind: input, shape index: {}]
  %s2 = inlined_call_operand.hbm [shape: f32[1,8], index: 2, kind: output, shape index: {}]
  %s3 = sld [smem:[#allocation0]]
  $region26: #{tpu_custom_call.1} parent=0
    _
  %s5 = ssub.s32 1, %s3
  %s6 = scalar_select 0, %s5, %s3
  $region1: #{tpu_custom_call.1} parent=0
    #allocation2 [shape = 'u8[1024]{0}', space=vmem, size = 0x400, scoped, tag = 'input window, operand 0, single buffered']
    #allocation3 [shape = 's32[1]{0}', space=sflag, size = 0x4, scoped, tag = 'scoped memory for tpu_custom_call.1']
    #allocation4 [shape = 's32[1]{0}', space=sflag, size = 0x4, scoped, tag = 'scoped memory for tpu_custom_call.1']
    #allocation5 [shape = 'u8[8192]{0}', space=vmem, size = 0x2000, scoped, tag = 'input window, operand 1, single buffered']
    #allocation6 [shape = 's32[1]{0}', space=sflag, size = 0x4, scoped, tag = 'scoped memory for tpu_custom_call.1']
    #allocation7 [shape = 'u8[512]{0}', space=vmem, size = 0x400, scoped, tag = 'output window, operand 0, single buffered']
    %7 = vsyncpa [#allocation3], 0
    %8 = vsyncpa [#allocation6], 0
    %9 = vsyncpa [#allocation4], 0
    // Predicated region
    $region2: #{tpu_custom_call.1} parent=1 // pred_check
      _
    $region3: #{tpu_custom_call.1} parent=1 // pred_check_branch
      %11 = sbr.rel (0) target = $region5
    $region4: #{tpu_custom_call.1} parent=1 // pred_region
      %s13 = ssub.s32 32, 32
      %14 = vsyncadd [#allocation3], %s13
      %s16 = sshll.u32 [#allocation2], 4
      %s17 = int_to_ptr.vmem [resolvable:$true] %s16
      %19 = dma.hbm_to_vmem [thread:$0]  %s0, 32, %s17, [#allocation3]
    $region5: #{tpu_custom_call.1} parent=1 // pred_fallthru
      _
    // Predicated region
    $region6: #{tpu_custom_call.1} parent=1 // pred_check
      _
    $region7: #{tpu_custom_call.1} parent=1 // pred_check_branch
      %21 = sbr.rel (0) target = $region9
    $region8: #{tpu_custom_call.1} parent=1 // pred_region
      %s23 = ssub.s32 256, 256
      %24 = vsyncadd [#allocation6], %s23
      %s25 = sshll.u32 [#allocation5], 4
      %s26 = int_to_ptr.vmem [resolvable:$true] %s25
      %31 = dma.hbm_to_vmem [thread:$0]  %s1, 256, %s26, [#allocation6], 128, 128, 8
    $region9: #{tpu_custom_call.1} parent=1 // pred_fallthru
      _
    // Predicated region
    $region10: #{tpu_custom_call.1} parent=1 // pred_check
      _
    $region11: #{tpu_custom_call.1} parent=1 // pred_check_branch
      %33 = sbr.rel (0) target = $region13
    $region12: #{tpu_custom_call.1} parent=1 // pred_region
      %34 = dma.done [#allocation3], 32
    $region13: #{tpu_custom_call.1} parent=1 // pred_fallthru
      _
    // Predicated region
    $region14: #{tpu_custom_call.1} parent=1 // pred_check
      _
    $region15: #{tpu_custom_call.1} parent=1 // pred_check_branch
      %36 = sbr.rel (0) target = $region17
    $region16: #{tpu_custom_call.1} parent=1 // pred_region
      %37 = dma.done [#allocation6], 256
    $region17: #{tpu_custom_call.1} parent=1 // pred_fallthru
      _
    %v38 = vld [vmem:[#allocation5] sm:$0xff]
    %v39 = vld [vmem:[#allocation5 + $0x8] sm:$0xff]
    %v40 = vld [vmem:[#allocation5] sm:$0x1]
    %v41 = vld [vmem:[#allocation2] sm:$0x3]
    %43 = vset.pattern.permute.xlu0 16
    %44 = vperm.xlu0 %43, %v38
    %v45 = vpop.permute.xlu0 %44
    %48 = vset.pattern.permute.xlu0 16
    %49 = vperm.xlu0 %48, %v39
    %v50 = vpop.permute.xlu0 %49
    %v52 = vlaneseq
    %v53 = vshrl.u32 %v52, 7
    %v54 = vsub.s32 0, %v53
    %v55 = vrot.slane %v41, %v54
    %v56 = vmul.f32 %v45, %v55
    %v57 = vmul.f32 %v50, %v55
    %58 = vset.pattern.permute.xlu0 18
    %59 = vperm.xlu0 %58, %v38
    %v60 = vpop.permute.xlu0 %59
    %62 = vset.pattern.permute.xlu0 18
    %63 = vperm.xlu0 %62, %v39
    %v64 = vpop.permute.xlu0 %63
    %v66 = vadd.f32 %v60, %v56
    %v67 = vadd.f32 %v64, %v57
    %68 = vset.pattern.permute.xlu0 17
    %69 = vperm.xlu0 %68, %v38
    %v70 = vpop.permute.xlu0 %69
    %72 = vset.pattern.permute.xlu0 17
    %73 = vperm.xlu0 %72, %v39
    %v74 = vpop.permute.xlu0 %73
    %v76 = vlaneseq
    %v77 = vshrl.u32 %v76, 7
    %v78 = vsub.s32 1, %v77
    %v79 = vrot.slane %v41, %v78
    %v80 = vmul.f32 %v70, %v79
    %v81 = vmul.f32 %v74, %v79
    %v82 = vadd.f32 %v66, %v80
    %v83 = vadd.f32 %v67, %v81
    %v84 = vmax.f32 %v82, 0.0
    %v85 = vmax.f32 %v83, 0.0
    %86 = vset.pattern.permute.xlu0 19
    %87 = vperm.xlu0 %86, %v38
    %v88 = vpop.permute.xlu0 %87
    %90 = vset.pattern.permute.xlu0 19
    %91 = vperm.xlu0 %90, %v39
    %v92 = vpop.permute.xlu0 %91
    %vm94 = vcmask 130048
    %v95 = vsel %vm94, %v38, 0
    %v97 = vsel %vm94, %v39, 0
    %99 = vmatprep.subr.mxu0 0.0
    %100 = vmatpush1.msra.mxu0 0.0
    %101 = vmatprep.subr.mxu0 0.0
    %102 = vmatpush1.msra.mxu0 0.0
    %103 = vmatprep.subr.mxu0 0.0
    %104 = vmatpush1.msra.mxu0 0.0
    %105 = vmatprep.subr.mxu0 0.0
    %106 = vmatpush1.msra.mxu0 0.0
    %107 = vmatprep.subr.mxu0 0.0
    %108 = vmatpush1.msra.mxu0 0.0
    %109 = vmatprep.subr.mxu0 0.0
    %110 = vmatpush1.msra.mxu0 0.0
    %111 = vmatprep.subr.mxu0 0.0
    %112 = vmatpush1.msra.mxu0 0.0
    %113 = vmatprep.subr.mxu0 0.0
    %114 = vmatpush1.msra.mxu0 0.0
    %115 = vmatprep.subr.mxu0 0.0
    %116 = vmatpush1.msra.mxu0 0.0
    %117 = vmatprep.subr.mxu0 0.0
    %118 = vmatpush1.msra.mxu0 0.0
    %119 = vmatprep.subr.mxu0 0.0
    %120 = vmatpush1.msra.mxu0 0.0
    %121 = vmatprep.subr.mxu0 0.0
    %122 = vmatpush1.msra.mxu0 0.0
    %123 = vmatprep.subr.mxu0 0.0
    %124 = vmatpush1.msra.mxu0 0.0
    %125 = vmatprep.subr.mxu0 0.0
    %126 = vmatpush1.msra.mxu0 0.0
    %127 = vmatprep.subr.mxu0 0.0
    %128 = vmatpush1.msra.mxu0 %v85
    %129 = vmatprep.subr.mxu0 0.0
    %130 = vmatpush1.msra.mxu0 %v84
    %131 = vmatprep.subr.mxu0 0.0
    %132 = vmatpush2.msra.mxu0 0.0
    %133 = vmatprep.subr.mxu0 0.0
    %134 = vmatpush2.msra.mxu0 0.0
    %135 = vmatprep.subr.mxu0 0.0
    %136 = vmatpush2.msra.mxu0 0.0
    %137 = vmatprep.subr.mxu0 0.0
    %138 = vmatpush2.msra.mxu0 0.0
    %139 = vmatprep.subr.mxu0 0.0
    %140 = vmatpush2.msra.mxu0 0.0
    %141 = vmatprep.subr.mxu0 0.0
    %142 = vmatpush2.msra.mxu0 0.0
    %143 = vmatprep.subr.mxu0 0.0
    %144 = vmatpush2.msra.mxu0 0.0
    %145 = vmatprep.subr.mxu0 0.0
    %146 = vmatpush2.msra.mxu0 0.0
    %147 = vmatprep.subr.mxu0 0.0
    %148 = vmatpush2.msra.mxu0 0.0
    %149 = vmatprep.subr.mxu0 0.0
    %150 = vmatpush2.msra.mxu0 0.0
    %151 = vmatprep.subr.mxu0 0.0
    %152 = vmatpush2.msra.mxu0 0.0
    %153 = vmatprep.subr.mxu0 0.0
    %154 = vmatpush2.msra.mxu0 0.0
    %155 = vmatprep.subr.mxu0 0.0
    %156 = vmatpush2.msra.mxu0 0.0
    %157 = vmatprep.subr.mxu0 0.0
    %158 = vmatpush2.msra.mxu0 0.0
    %159 = vmatprep.subr.mxu0 0.0
    %160 = vmatpush2.msra.mxu0 0.0
    %161 = vmatprep.subr.mxu0 0.0
    %162 = vmatpush2.msra.mxu0 0.0
    %163 = vmatprep.mubr.f32.mxu0 0.0
    %164 = vmatmul.mubr.f32.gmra.mxu0 %v95
    %v165 = vpop.f32.mrf.mxu0
    %v166 = vadd.f32 %v88, %v165
    %v167 = vpop.f32.mrf.mxu0
    %168 = vmatprep.mubr.f32.mxu0 0.0
    %169 = vmatmul.mubr.f32.gmra.mxu0 %v97
    %v170 = vpop.f32.mrf.mxu0
    %v171 = vadd.f32 %v92, %v170
    %v172 = vpop.f32.mrf.mxu0
    %173 = vdwg.mxu0
    %v174 = vmax.f32 %v166, 0.0
    %v175 = vmax.f32 %v171, 0.0
    %176 = vset.pattern.permute.xlu0 20
    %177 = vperm.xlu0 %176, %v38
    %v178 = vpop.permute.xlu0 %177
    %180 = vset.pattern.permute.xlu0 20
    %181 = vperm.xlu0 %180, %v39
    %v182 = vpop.permute.xlu0 %181
    %v184 = vmul.f32 %v178, %v174
    %v185 = vmul.f32 %v182, %v175
    %v186 = vadd.f32 %v184, %v185
    %v187 = vrot.slane %v186, 4
    %v188 = vadd.f32 %v186, %v187
    %v189 = vrot.slane %v188, 2
    %v190 = vadd.f32 %v188, %v189
    %v191 = vrot.slane %v190, 1
    %v192 = vadd.f32 %v190, %v191
    %194 = vset.pattern.permute.xlu0 21
    %195 = vperm.xlu0 %194, %v40
    %v196 = vpop.permute.xlu0 %195
    %v198 = vadd.f32 %v192, %v196
    %v199 = vtanh.pop %v198
    %200 = vst [vmem:[#allocation7] sm:$0x1] %v199
    // Predicated region
    $region18: #{tpu_custom_call.1} parent=1 // pred_check
      _
    $region19: #{tpu_custom_call.1} parent=1 // pred_check_branch
      %202 = sbr.rel (0) target = $region21
    $region20: #{tpu_custom_call.1} parent=1 // pred_region
      %s204 = ssub.s32 16, 16
      %205 = vsyncadd [#allocation4], %s204
      %s207 = sshll.u32 [#allocation7], 4
      %s208 = int_to_ptr.vmem [resolvable:$true] %s207
      %210 = dma.vmem_to_hbm [thread:$0]  %s208, 16, %s2, [#allocation4]
    $region21: #{tpu_custom_call.1} parent=1 // pred_fallthru
      _
    // Predicated region
    $region22: #{tpu_custom_call.1} parent=1 // pred_check
      _
    $region23: #{tpu_custom_call.1} parent=1 // pred_check_branch
      %212 = sbr.rel (0) target = $region25
    $region24: #{tpu_custom_call.1} parent=1 // pred_region
      %213 = dma.done [#allocation4], 16
    $region25: #{tpu_custom_call.1} parent=1 // pred_fallthru
      _
    %214 = vsyncpa [#allocation3], 1
    %215 = vsyncpa [#allocation6], 1
    %216 = vsyncpa [#allocation4], 1

</llo_original>
